<compile_context>
chip_gen: v6e
topology: v6e:2x2x1
jax: 0.10.0
libtpu: 0.0.40
codegen_flags: <defaults>
</compile_context>

<pallas_src>
import functools

import jax
import jax.numpy as jnp
from jax.experimental import pallas as pl
from jax.experimental.pallas import tpu as pltpu

_LANES = 128
_SUBLANES = 8


def _xsig_val(yt, yp):
    # ey_t = y_t - y_prime_t + 1e-12 ; 2e*sigmoid(e) - e == e*tanh(e/2)
    e = yt - yp + jnp.float32(1e-12)
    return e * jnp.tanh(jnp.float32(0.5) * e)


def _xsigmoid_mean_kernel(total_n, yt_ref, yp_ref, out_ref, acc_ref):
    i = pl.program_id(0)

    @pl.when(i == 0)
    def _():
        acc_ref[...] = jnp.zeros_like(acc_ref)

    val = _xsig_val(yt_ref[...], yp_ref[...])

    # Accumulate into a vreg-shaped (8,128) accumulator with VPU-only adds;
    # the reshape only regroups whole 8-row (sublane-aligned) blocks, so it
    # never crosses an (8,128) tile boundary.
    tr = val.shape[0]
    acc_ref[...] += jnp.sum(
        val.reshape(tr // _SUBLANES, _SUBLANES, _LANES), axis=0
    )

    @pl.when(i == pl.num_programs(0) - 1)
    def _():
        # Single cross-lane/sublane reduction, only in the epilogue.
        out_ref[...] = jnp.sum(acc_ref[...], keepdims=True) / jnp.float32(total_n)


def _xsigmoid_none_kernel(yt_ref, yp_ref, out_ref):
    out_ref[...] = _xsig_val(yt_ref[...], yp_ref[...])


def _pad_to_slab(y_t, y_prime_t, max_tile_rows):
    """Flatten + pad both inputs to a (rows, 128) f32 slab."""
    total_n = int(y_t.size)
    assert total_n >= 1

    # Rows needed at 128 lanes, rounded up to the f32 sublane multiple (8).
    rows_needed = -(-total_n // _LANES)
    rows_min = -(-rows_needed // _SUBLANES) * _SUBLANES

    # Tile rows: as large as allowed, but never more than the data needs
    # (tiny inputs -> single grid step); always a multiple of 8.
    tile_rows = min(max_tile_rows, rows_min)
    tile_rows = -(-tile_rows // _SUBLANES) * _SUBLANES

    # Pad total rows up to a multiple of tile_rows.
    rows = -(-rows_min // tile_rows) * tile_rows
    padded_n = rows * _LANES

    yt_flat = jnp.ravel(y_t).astype(jnp.float32)
    yp_flat = jnp.ravel(y_prime_t).astype(jnp.float32)
    if padded_n > total_n:
        pad = padded_n - total_n
        yt_flat = jnp.pad(yt_flat, (0, pad))
        yp_flat = jnp.pad(yp_flat, (0, pad))

    return (yt_flat.reshape(rows, _LANES),
            yp_flat.reshape(rows, _LANES),
            total_n, rows, tile_rows)


def xsigmoid_loss_mean(y_t, y_prime_t, *, max_tile_rows=2048):
    assert y_t.shape == y_prime_t.shape
    yt2, yp2, total_n, rows, tile_rows = _pad_to_slab(y_t, y_prime_t, max_tile_rows)
    grid = (rows // tile_rows,)

    out = pl.pallas_call(
        functools.partial(_xsigmoid_mean_kernel, total_n),
        out_shape=jax.ShapeDtypeStruct((1, 1), jnp.float32),
        grid_spec=pltpu.PrefetchScalarGridSpec(
            num_scalar_prefetch=0,
            grid=grid,
            in_specs=[
                pl.BlockSpec((tile_rows, _LANES), lambda i: (i, 0)),
                pl.BlockSpec((tile_rows, _LANES), lambda i: (i, 0)),
            ],
            out_specs=pl.BlockSpec((1, 1), lambda i: (0, 0)),
            scratch_shapes=[pltpu.VMEM((_SUBLANES, _LANES), jnp.float32)],
        ),
        compiler_params=pltpu.CompilerParams(
            # Grid axis is a reduction into the persistent accumulator.
            dimension_semantics=("arbitrary",),
        ),
    )(yt2, yp2)
    return out[0, 0]


def xsigmoid_loss_none(y_t, y_prime_t, *, max_tile_rows=2048):
    assert y_t.shape == y_prime_t.shape
    orig_shape = y_t.shape
    yt2, yp2, total_n, rows, tile_rows = _pad_to_slab(y_t, y_prime_t, max_tile_rows)
    grid = (rows // tile_rows,)

    out2 = pl.pallas_call(
        _xsigmoid_none_kernel,
        out_shape=jax.ShapeDtypeStruct((rows, _LANES), jnp.float32),
        grid_spec=pltpu.PrefetchScalarGridSpec(
            num_scalar_prefetch=0,
            grid=grid,
            in_specs=[
                pl.BlockSpec((tile_rows, _LANES), lambda i: (i, 0)),
                pl.BlockSpec((tile_rows, _LANES), lambda i: (i, 0)),
            ],
            out_specs=pl.BlockSpec((tile_rows, _LANES), lambda i: (i, 0)),
        ),
        compiler_params=pltpu.CompilerParams(
            dimension_semantics=("parallel",),
        ),
    )(yt2, yp2)
    return jnp.ravel(out2)[:total_n].reshape(orig_shape)


def xsigmoid_loss_ref(y_t, y_prime_t, reduction="mean"):
    e = y_t.astype(jnp.float32) - y_prime_t.astype(jnp.float32) + 1e-12
    v = 2.0 * e / (1.0 + jnp.exp(-e)) - e
    return jnp.mean(v) if reduction == "mean" else v


if __name__ == "__main__":
    key = jax.random.PRNGKey(0)
    k1, k2, k3, k4 = jax.random.split(key, 4)

    # NCHW-like small shape; the loss is shape-agnostic.
    shape = (2, 4, 16, 16)
    y_t = jax.random.normal(k1, shape, dtype=jnp.float32)
    y_prime_t = jax.random.normal(k2, shape, dtype=jnp.float32)

    out_mean = jax.block_until_ready(xsigmoid_loss_mean(y_t, y_prime_t))
    ref_mean = xsigmoid_loss_ref(y_t, y_prime_t, "mean")
    assert jnp.allclose(out_mean, ref_mean, atol=1e-5, rtol=1e-5), (out_mean, ref_mean)

    # Odd-sized shape to exercise the padding path, plus the 'none' reduction.
    shape2 = (3, 5, 7)
    a = jax.random.normal(k3, shape2, dtype=jnp.float32)
    b = jax.random.normal(k4, shape2, dtype=jnp.float32)

    out_mean2 = jax.block_until_ready(xsigmoid_loss_mean(a, b))
    ref_mean2 = xsigmoid_loss_ref(a, b, "mean")
    assert jnp.allclose(out_mean2, ref_mean2, atol=1e-5, rtol=1e-5), (out_mean2, ref_mean2)

    out_none = jax.block_until_ready(xsigmoid_loss_none(a, b))
    ref_none = xsigmoid_loss_ref(a, b, "none")
    assert out_none.shape == shape2
    assert jnp.allclose(out_none, ref_none, atol=1e-5, rtol=1e-5)

    print("KERNEL_OK")
</pallas_src>

<mosaic_0001>
module attributes {stable_mosaic.version = 11 : i64} {
  func.func @_xsigmoid_mean_kernel(%arg0: i32, %arg1: memref<16x128xf32, #tpu.memory_space<vmem>>, %arg2: memref<16x128xf32, #tpu.memory_space<vmem>>, %arg3: memref<1x1xf32, #tpu.memory_space<vmem>>, %arg4: memref<8x128xf32, #tpu.memory_space<vmem>>) attributes {dimension_semantics = [#tpu.dimension_semantics<arbitrary>], iteration_bounds = array<i64: 1>, scalar_prefetch = 0 : i64, scratch_operands = 1 : i64, tpu.core_type = #tpu.core_type<tc>, window_params = [{transform_indices = @transform_0, window_bounds = array<i64: 16, 128>}, {transform_indices = @transform_1, window_bounds = array<i64: 16, 128>}, {pipeline_mode = #tpu.pipeline_mode<synchronous>, transform_indices = @transform_2, window_bounds = array<i64: 1, 1>}]} {
    %c0_i32 = arith.constant 0 : i32
    %0 = arith.cmpi eq, %arg0, %c0_i32 : i32
    %1 = arith.extui %0 : i1 to i32
    %c0_i32_0 = arith.constant 0 : i32
    %2 = arith.cmpi ne, %1, %c0_i32_0 : i32
    scf.if %2 {
      %cst_12 = arith.constant 0.000000e+00 : f32
      %20 = vector.broadcast %cst_12 : f32 to vector<8x128xf32>
      %c0_13 = arith.constant 0 : index
      %c0_14 = arith.constant 0 : index
      %21 = vector.load %arg4[%c0_13, %c0_14] : memref<8x128xf32, #tpu.memory_space<vmem>>, vector<8x128xf32>
      tpu.vector_store %arg4[%c0_13, %c0_14], %20 {strides = array<i32>} : memref<8x128xf32, #tpu.memory_space<vmem>>, vector<8x128xf32>,
    } else {
    }
    %c0 = arith.constant 0 : index
    %c0_1 = arith.constant 0 : index
    %3 = vector.load %arg1[%c0, %c0_1] : memref<16x128xf32, #tpu.memory_space<vmem>>, vector<16x128xf32>
    %c0_2 = arith.constant 0 : index
    %c0_3 = arith.constant 0 : index
    %4 = vector.load %arg2[%c0_2, %c0_3] : memref<16x128xf32, #tpu.memory_space<vmem>>, vector<16x128xf32>
    %5 = arith.subf %3, %4 : vector<16x128xf32>
    %cst = arith.constant 9.99999996E-13 : f32
    %6 = vector.broadcast %cst : f32 to vector<16x128xf32>
    %7 = arith.addf %5, %6 : vector<16x128xf32>
    %cst_4 = arith.constant 5.000000e-01 : f32
    %8 = vector.broadcast %cst_4 : f32 to vector<16x128xf32>
    %9 = arith.mulf %8, %7 : vector<16x128xf32>
    %10 = math.tanh %9 : vector<16x128xf32>
    %11 = arith.mulf %7, %10 : vector<16x128xf32>
    %c0_5 = arith.constant 0 : index
    %c0_6 = arith.constant 0 : index
    %12 = vector.load %arg4[%c0_5, %c0_6] : memref<8x128xf32, #tpu.memory_space<vmem>>, vector<8x128xf32>
    %13 = vector.shape_cast %11 : vector<16x128xf32> to vector<2x8x128xf32>
    %cst_7 = arith.constant dense<0.000000e+00> : vector<8x128xf32>
    %14 = vector.multi_reduction <add>, %13, %cst_7 [0] : vector<2x8x128xf32> to vector<8x128xf32>
    %15 = arith.addf %12, %14 : vector<8x128xf32>
    %c0_8 = arith.constant 0 : index
    %c0_9 = arith.constant 0 : index
    %16 = vector.load %arg4[%c0_8, %c0_9] : memref<8x128xf32, #tpu.memory_space<vmem>>, vector<8x128xf32>
    tpu.vector_store %arg4[%c0_8, %c0_9], %15 {strides = array<i32>} : memref<8x128xf32, #tpu.memory_space<vmem>>, vector<8x128xf32>,
    %c0_i32_10 = arith.constant 0 : i32
    %17 = arith.cmpi eq, %arg0, %c0_i32_10 : i32
    %18 = arith.extui %17 : i1 to i32
    %c0_i32_11 = arith.constant 0 : i32
    %19 = arith.cmpi ne, %18, %c0_i32_11 : i32
    scf.if %19 {
      %c0_12 = arith.constant 0 : index
      %c0_13 = arith.constant 0 : index
      %20 = vector.load %arg4[%c0_12, %c0_13] : memref<8x128xf32, #tpu.memory_space<vmem>>, vector<8x128xf32>
      %21 = vector.shape_cast %20 : vector<8x128xf32> to vector<1x8x128xf32>
      %cst_14 = arith.constant dense<0.000000e+00> : vector<1xf32>
      %22 = vector.multi_reduction <add>, %21, %cst_14 [1, 2] : vector<1x8x128xf32> to vector<1xf32>
      %23 = vector.shape_cast %22 : vector<1xf32> to vector<1x1x1xf32>
      %24 = vector.extract %23[0, 0, 0] : f32 from vector<1x1x1xf32>
      %25 = vector.broadcast %24 : f32 to vector<1x1xf32>
      %cst_15 = arith.constant 2.048000e+03 : f32
      %26 = vector.broadcast %cst_15 : f32 to vector<1x1xf32>
      %27 = arith.divf %25, %26 : vector<1x1xf32>
      %c0_16 = arith.constant 0 : index
      %c0_17 = arith.constant 0 : index
      %28 = vector.load %arg3[%c0_16, %c0_17] : memref<1x1xf32, #tpu.memory_space<vmem>>, vector<1x1xf32>
      tpu.vector_store %arg3[%c0_16, %c0_17], %27 {strides = array<i32>} : memref<1x1xf32, #tpu.memory_space<vmem>>, vector<1x1xf32>,
    } else {
    }
    return
  }
  func.func @transform_0(%arg0: i32) -> (i32, i32) {
    %c0_i32 = arith.constant 0 : i32
    %c0_i32_0 = arith.constant 0 : i32
    return %arg0, %c0_i32 : i32, i32
  }
  func.func @transform_1(%arg0: i32) -> (i32, i32) {
    %c0_i32 = arith.constant 0 : i32
    %c0_i32_0 = arith.constant 0 : i32
    return %arg0, %c0_i32 : i32, i32
  }
  func.func @transform_2(%arg0: i32) -> (i32, i32) {
    %c0_i32 = arith.constant 0 : i32
    %c0_i32_0 = arith.constant 0 : i32
    %c0_i32_1 = arith.constant 0 : i32
    return %c0_i32, %c0_i32_0 : i32, i32
  }
}

</mosaic_0001>

<llo_original>
// kernel: tpu_custom_call.1
$region0: #{tpu_custom_call.1}
  #allocation0 [shape = 'u32[]', space=smem, size = 0x4, offset = 0x4, fixed_abs, tag = 'smem constant byte address 0x4 - core index']
  #allocation1 [shape = 'u32[144,128]{1,0:T(1,128)}', space=vmem, size = 0x12000, scoped, tag = 'internal scratch']
  #allocation2 [shape = 'f32[8,128]{1,0:T(8,128)}', space=vmem, size = 0x1000, scoped, tag = 'scratch operand']
  %s0 = inlined_call_operand.hbm [shape: f32[16,128], index: 0, kind: input, shape index: {}]
  %s1 = inlined_call_operand.hbm [shape: f32[16,128], index: 1, kind: input, shape index: {}]
  %s2 = inlined_call_operand.hbm [shape: f32[1,1], index: 2, kind: output, shape index: {}]
  %s3 = sld [smem:[#allocation0]]
  $region34: #{tpu_custom_call.1} parent=0
    _
  %s5 = ssub.s32 1, %s3
  %s6 = scalar_select 0, %s5, %s3
  $region1: #{tpu_custom_call.1} parent=0
    #allocation3 [shape = 'u8[8192]{0}', space=vmem, size = 0x2000, scoped, tag = 'input window, operand 0, single buffered']
    #allocation4 [shape = 's32[1]{0}', space=sflag, size = 0x4, scoped, tag = 'scoped memory for tpu_custom_call.1']
    #allocation5 [shape = 's32[1]{0}', space=sflag, size = 0x4, scoped, tag = 'scoped memory for tpu_custom_call.1']
    #allocation6 [shape = 'u8[8192]{0}', space=vmem, size = 0x2000, scoped, tag = 'input window, operand 1, single buffered']
    #allocation7 [shape = 's32[1]{0}', space=sflag, size = 0x4, scoped, tag = 'scoped memory for tpu_custom_call.1']
    #allocation8 [shape = 'u8[512]{0}', space=vmem, size = 0x400, scoped, tag = 'output window, operand 0, single buffered']
    %7 = vsyncpa [#allocation4], 0
    %8 = vsyncpa [#allocation7], 0
    %9 = vsyncpa [#allocation5], 0
    // Predicated region
    $region2: #{tpu_custom_call.1} parent=1 // pred_check
      _
    $region3: #{tpu_custom_call.1} parent=1 // pred_check_branch
      %11 = sbr.rel (0) target = $region5
    $region4: #{tpu_custom_call.1} parent=1 // pred_region
      %s13 = ssub.s32 256, 256
      %14 = vsyncadd [#allocation4], %s13
      %s15 = sshll.u32 [#allocation3], 4
      %s16 = int_to_ptr.vmem [resolvable:$true] %s15
      %21 = dma.hbm_to_vmem [thread:$0]  %s0, 256, %s16, [#allocation4], 128, 128, 8
    $region5: #{tpu_custom_call.1} parent=1 // pred_fallthru
      _
    // Predicated region
    $region6: #{tpu_custom_call.1} parent=1 // pred_check
      _
    $region7: #{tpu_custom_call.1} parent=1 // pred_check_branch
      %23 = sbr.rel (0) target = $region9
    $region8: #{tpu_custom_call.1} parent=1 // pred_region
      %s25 = ssub.s32 256, 256
      %26 = vsyncadd [#allocation7], %s25
      %s27 = sshll.u32 [#allocation6], 4
      %s28 = int_to_ptr.vmem [resolvable:$true] %s27
      %33 = dma.hbm_to_vmem [thread:$0]  %s1, 256, %s28, [#allocation7], 128, 128, 8
    $region9: #{tpu_custom_call.1} parent=1 // pred_fallthru
      _
    // Predicated region
    $region10: #{tpu_custom_call.1} parent=1 // pred_check
      _
    $region11: #{tpu_custom_call.1} parent=1 // pred_check_branch
      %35 = sbr.rel (0) target = $region13
    $region12: #{tpu_custom_call.1} parent=1 // pred_region
      %36 = dma.done [#allocation4], 256
    $region13: #{tpu_custom_call.1} parent=1 // pred_fallthru
      _
    // Predicated region
    $region14: #{tpu_custom_call.1} parent=1 // pred_check
      _
    $region15: #{tpu_custom_call.1} parent=1 // pred_check_branch
      %38 = sbr.rel (0) target = $region17
    $region16: #{tpu_custom_call.1} parent=1 // pred_region
      %39 = dma.done [#allocation7], 256
    $region17: #{tpu_custom_call.1} parent=1 // pred_fallthru
      _
    %p40 = scmp.eq.s32.totalorder 0, 0
    // Predicated region
    $region18: #{tpu_custom_call.1} parent=1 // pred_check
      %p41 = pneg %p40
    $region19: #{tpu_custom_call.1} parent=1 // pred_check_branch
      %43 = sbr.rel (%p41) target = $region21
    $region20: #{tpu_custom_call.1} parent=1 // pred_region
      %44 = vst [vmem:[#allocation2] sm:$0xff] 0.0
    $region21: #{tpu_custom_call.1} parent=1 // pred_fallthru
      _
    %v45 = vld [vmem:[#allocation3] sm:$0xff]
    %v46 = vld [vmem:[#allocation3 + $0x8] sm:$0xff]
    %v47 = vld [vmem:[#allocation6] sm:$0xff]
    %v48 = vld [vmem:[#allocation6 + $0x8] sm:$0xff]
    %v49 = vsub.f32 %v45, %v47
    %v50 = vsub.f32 %v46, %v48
    %v51 = vadd.f32 %v49, 1e-12
    %v52 = vadd.f32 %v50, 1e-12
    %v53 = vmul.f32 %v51, 0.5
    %v54 = vmul.f32 %v52, 0.5
    %v55 = vtanh.pop %v53
    %v56 = vtanh.pop %v54
    %v57 = vmul.f32 %v51, %v55
    %v58 = vmul.f32 %v52, %v56
    %v59 = vld [vmem:[#allocation2] sm:$0xff]
    %v60 = vadd.f32 %v57, %v58
    %v61 = vadd.f32 %v59, %v60
    %62 = vst [vmem:[#allocation2] sm:$0xff] %v61
    // Predicated region
    $region22: #{tpu_custom_call.1} parent=1 // pred_check
      %p63 = pneg %p40
    $region23: #{tpu_custom_call.1} parent=1 // pred_check_branch
      %65 = sbr.rel (%p63) target = $region25
    $region24: #{tpu_custom_call.1} parent=1 // pred_region
      %v66 = vld [vmem:[#allocation2] sm:$0xff]
      %67 = vadd.xlane.f32.xlu0 %v66
      %v68 = vpop.xlane.xlu0 %67
      %v69 = vrot.slane %v68, 4
      %v70 = vadd.f32 %v68, %v69
      %v71 = vrot.slane %v70, 2
      %v72 = vadd.f32 %v70, %v71
      %v73 = vrot.slane %v72, 1
      %v74 = vadd.f32 %v72, %v73
      %s75 = vtos %v74
      %v76 = vstv %s75
      %v77 = vrcp.pop 2048.0
      %v78 = vmul.f32 %v76, %v77
      %vm79 = vcmask 0
      %80 = vst.msk [vmem:[#allocation8] sm:$0x1] %vm79, %v78
    $region25: #{tpu_custom_call.1} parent=1 // pred_fallthru
      _
    // Predicated region
    $region26: #{tpu_custom_call.1} parent=1 // pred_check
      _
    $region27: #{tpu_custom_call.1} parent=1 // pred_check_branch
      %82 = sbr.rel (0) target = $region29
    $region28: #{tpu_custom_call.1} parent=1 // pred_region
      %s84 = ssub.s32 16, 16
      %85 = vsyncadd [#allocation5], %s84
      %s87 = sshll.u32 [#allocation8], 4
      %s88 = int_to_ptr.vmem [resolvable:$true] %s87
      %90 = dma.vmem_to_hbm [thread:$0]  %s88, 16, %s2, [#allocation5]
    $region29: #{tpu_custom_call.1} parent=1 // pred_fallthru
      _
    // Predicated region
    $region30: #{tpu_custom_call.1} parent=1 // pred_check
      _
    $region31: #{tpu_custom_call.1} parent=1 // pred_check_branch
      %92 = sbr.rel (0) target = $region33
    $region32: #{tpu_custom_call.1} parent=1 // pred_region
      %93 = dma.done [#allocation5], 16
    $region33: #{tpu_custom_call.1} parent=1 // pred_fallthru
      _
    %94 = vsyncpa [#allocation4], 1
    %95 = vsyncpa [#allocation7], 1
    %96 = vsyncpa [#allocation5], 1

</llo_original>
